<compile_context>
chip_gen: v5e
topology: v5e:2x2
jax: 0.10.0
libtpu: 0.0.40
codegen_flags: <defaults>
</compile_context>

<pallas_src>
import jax
import jax.numpy as jnp
from jax.experimental import pallas as pl
from jax.experimental.pallas import tpu as pltpu

HIDDEN = 256
LANES = 128
MAX_BATCH_TILE = 1024   # rows per grid step for large batches


def _round_up(x, m):
    return ((x + m - 1) // m) * m


def _pick_batch_tile(B):
    """Batch tile: whole batch when tiny; otherwise >=2 grid steps (v7x 2 TCs)."""
    if B <= 64:
        return B
    # multiple of 16 keeps bf16 sublane packing happy; cap by MAX_BATCH_TILE
    return min(MAX_BATCH_TILE, _round_up(pl.cdiv(B, 2), 16))


def _lstm_head_kernel(x_ref, w_in_ref, b_ref, w1_ref, b1_ref, w2_ref, b2_ref,
                      out_ref):
    """Fused 1-step LSTM cell (zero init state, i/g/o gates only) + fc1 + relu + fc2.

    MXU runs native bf16 x bf16 -> f32; all elementwise / gate math is f32.
    """
    H = HIDDEN
    x = x_ref[...]                                            # [TB, E+F] bf16

    # gates = x @ W_in + (b_ih + b_hh)   -> [TB, 3H] f32
    gates = jnp.dot(x, w_in_ref[...], preferred_element_type=jnp.float32)
    gates = gates + b_ref[...]

    i = jax.nn.sigmoid(gates[:, 0 * H:1 * H])                 # EUP
    g = jnp.tanh(gates[:, 1 * H:2 * H])
    o = jax.nn.sigmoid(gates[:, 2 * H:3 * H])

    h = o * jnp.tanh(i * g)                                   # c1 = i * g (c0 == 0)

    y1 = jnp.dot(h.astype(jnp.bfloat16), w1_ref[...],
                 preferred_element_type=jnp.float32)
    y1 = jnp.maximum(y1 + b1_ref[...], 0.0)                   # relu(fc1)

    y2 = jnp.dot(y1.astype(jnp.bfloat16), w2_ref[...],
                 preferred_element_type=jnp.float32)
    out_ref[...] = (y2 + b2_ref[...]).astype(out_ref.dtype)   # lane-dense [TB, C_pad]


def prepare_params(params, num_classes, embedding_dim):
    """One-time weight prep: 3-gate slice, transpose, bias fold, bf16, lane padding."""
    del embedding_dim  # W_in kept fused: one [E+F, 3H] matrix (K = E+F = 128)
    H = HIDDEN
    w_ih = params["w_ih"]                                     # [4H, E+F], rows (i,f,g,o)
    w_igo = jnp.concatenate([w_ih[0 * H:1 * H],               # drop dead forget gate
                             w_ih[2 * H:3 * H],
                             w_ih[3 * H:4 * H]], axis=0)      # [3H, E+F]
    w_in_t = w_igo.T.astype(jnp.bfloat16)                     # [E+F, 3H] bf16

    b = params["b_ih"] + params["b_hh"]                       # [4H]
    b_gates = jnp.concatenate(
        [b[0 * H:1 * H], b[2 * H:3 * H], b[3 * H:4 * H]]
    ).reshape(1, 3 * H).astype(jnp.float32)

    w1_t = params["w1"].T.astype(jnp.bfloat16)                # [H, H]
    b1 = params["b1"].reshape(1, H).astype(jnp.float32)

    c_pad = max(LANES, _round_up(num_classes, LANES))
    w2_t = (jnp.zeros((H, c_pad), jnp.float32)
            .at[:, :num_classes].set(params["w2"].T)).astype(jnp.bfloat16)
    b2 = jnp.zeros((1, c_pad), jnp.float32).at[:, :num_classes].set(params["b2"])

    return {
        "w_in_t": w_in_t, "b_gates": b_gates,
        "w1_t": w1_t, "b1": b1,
        "w2_t": w2_t, "b2": b2,
        "num_classes": num_classes, "c_pad": c_pad,
    }


def lstm_forward(embeddings, features, prep):
    """Calls the fused kernel. Only a concat + bf16 cast in the hot wrapper path."""
    x = jnp.concatenate([embeddings, features], axis=-1).astype(jnp.bfloat16)
    B, K = x.shape                                            # K = E + F (=128)
    H = HIDDEN
    c_pad = prep["c_pad"]

    tb = _pick_batch_tile(B)
    grid = (pl.cdiv(B, tb),)

    batch_spec = lambda cols: pl.BlockSpec((tb, cols), lambda b: (b, 0))
    # Grid-invariant blocks: fetched once, no second pipeline buffer needed.
    weight_spec = lambda shape: pl.BlockSpec(shape, lambda b: (0, 0),
                                             pipeline_mode=pl.Buffered(1))

    out_padded = pl.pallas_call(
        _lstm_head_kernel,
        out_shape=jax.ShapeDtypeStruct((B, c_pad), jnp.float32),
        grid_spec=pl.GridSpec(
            grid=grid,
            in_specs=[
                batch_spec(K),                    # x = cat(emb, feat)  [TB, K] bf16
                weight_spec((K, 3 * H)),          # W_in  (bf16)
                weight_spec((1, 3 * H)),          # b_ih + b_hh (i,g,o) f32
                weight_spec((H, H)),              # W1^T (bf16)
                weight_spec((1, H)),              # b1   f32
                weight_spec((H, c_pad)),          # W2^T padded (bf16)
                weight_spec((1, c_pad)),          # b2 padded   f32
            ],
            out_specs=batch_spec(c_pad),
        ),
        compiler_params=pltpu.CompilerParams(
            dimension_semantics=("parallel",)),
    )(x, prep["w_in_t"], prep["b_gates"], prep["w1_t"], prep["b1"],
      prep["w2_t"], prep["b2"])

    return out_padded[:, :prep["num_classes"]]


def init_params(key, embedding_dim, num_features, num_classes):
    d_in = embedding_dim + num_features
    k = 1.0 / jnp.sqrt(HIDDEN)
    ks = jax.random.split(key, 8)
    u = lambda kk, shape: jax.random.uniform(kk, shape, jnp.float32, -k, k)
    return {
        "w_ih": u(ks[0], (4 * HIDDEN, d_in)),
        "b_ih": u(ks[1], (4 * HIDDEN,)),
        "b_hh": u(ks[2], (4 * HIDDEN,)),
        "w1": u(ks[3], (HIDDEN, HIDDEN)),
        "b1": u(ks[4], (HIDDEN,)),
        "w2": u(ks[5], (num_classes, HIDDEN)),
        "b2": u(ks[6], (num_classes,)),
    }
    # NOTE: W_hh (4H x H) is omitted: with a single time step and h0 = 0 it
    # never contributes to the forward pass.


def _reference_quantized(embeddings, features, prep):
    """Same math as the kernel (bf16-rounded activations/weights, f32 accum)."""
    H = HIDDEN
    hp = jax.lax.Precision.HIGHEST
    x = jnp.concatenate([embeddings, features], axis=-1)
    x = x.astype(jnp.bfloat16).astype(jnp.float32)
    gates = jnp.dot(x, prep["w_in_t"].astype(jnp.float32), precision=hp) + prep["b_gates"]
    i = jax.nn.sigmoid(gates[:, 0 * H:1 * H])
    g = jnp.tanh(gates[:, 1 * H:2 * H])
    o = jax.nn.sigmoid(gates[:, 2 * H:3 * H])
    h = (o * jnp.tanh(i * g)).astype(jnp.bfloat16).astype(jnp.float32)
    y1 = jnp.maximum(
        jnp.dot(h, prep["w1_t"].astype(jnp.float32), precision=hp) + prep["b1"], 0.0)
    y1 = y1.astype(jnp.bfloat16).astype(jnp.float32)
    y2 = jnp.dot(y1, prep["w2_t"].astype(jnp.float32), precision=hp) + prep["b2"]
    return y2[:, :prep["num_classes"]]


def _reference_f32(embeddings, features, params):
    """Full-precision PyTorch-semantics reference (checks bf16 quant is benign)."""
    hp = jax.lax.Precision.HIGHEST
    x = jnp.concatenate([embeddings, features], axis=-1)
    gates = jnp.dot(x, params["w_ih"].T, precision=hp) + params["b_ih"] + params["b_hh"]
    i = jax.nn.sigmoid(gates[:, 0 * HIDDEN:1 * HIDDEN])
    g = jnp.tanh(gates[:, 2 * HIDDEN:3 * HIDDEN])
    o = jax.nn.sigmoid(gates[:, 3 * HIDDEN:4 * HIDDEN])
    h = o * jnp.tanh(i * g)
    y = jnp.maximum(jnp.dot(h, params["w1"].T, precision=hp) + params["b1"], 0.0)
    return jnp.dot(y, params["w2"].T, precision=hp) + params["b2"]


if __name__ == "__main__":
    B, E, F, C = 8, 32, 96, 8  # batch, embedding_dim, num_features, num_classes

    key = jax.random.PRNGKey(0)
    k_emb, k_feat, k_params = jax.random.split(key, 3)
    embeddings = jax.random.normal(k_emb, (B, E), jnp.float32)
    features = jax.random.normal(k_feat, (B, F), jnp.float32)
    params = init_params(k_params, E, F, C)
    prep = prepare_params(params, C, E)

    out = jax.block_until_ready(lstm_forward(embeddings, features, prep))
    assert out.shape == (B, C)

    ref_q = _reference_quantized(embeddings, features, prep)
    assert jnp.allclose(out, ref_q, atol=2e-3, rtol=2e-3), "mismatch vs quantized ref"

    ref_f = _reference_f32(embeddings, features, params)
    assert jnp.allclose(out, ref_f, atol=5e-2, rtol=5e-2), "bf16 drifted too far"

    # Larger batch: exercises the multi-step grid (2 TC split) + partial last tile.
    B2 = 200
    k1, k2 = jax.random.split(jax.random.PRNGKey(1))
    emb2 = jax.random.normal(k1, (B2, E), jnp.float32)
    feat2 = jax.random.normal(k2, (B2, F), jnp.float32)
    out2 = jax.block_until_ready(lstm_forward(emb2, feat2, prep))
    assert out2.shape == (B2, C)
    ref2 = _reference_quantized(emb2, feat2, prep)
    assert jnp.allclose(out2, ref2, atol=2e-3, rtol=2e-3), "mismatch on tiled batch"

    print("KERNEL_OK")
</pallas_src>

<mosaic_0001>
module attributes {stable_mosaic.version = 11 : i64} {
  func.func @_lstm_head_kernel(%arg0: i32, %arg1: memref<8x128xbf16, #tpu.memory_space<vmem>>, %arg2: memref<128x768xbf16, #tpu.memory_space<vmem>>, %arg3: memref<1x768xf32, #tpu.memory_space<vmem>>, %arg4: memref<256x256xbf16, #tpu.memory_space<vmem>>, %arg5: memref<1x256xf32, #tpu.memory_space<vmem>>, %arg6: memref<256x128xbf16, #tpu.memory_space<vmem>>, %arg7: memref<1x128xf32, #tpu.memory_space<vmem>>, %arg8: memref<8x128xf32, #tpu.memory_space<vmem>>) attributes {dimension_semantics = [#tpu.dimension_semantics<parallel>], iteration_bounds = array<i64: 1>, scalar_prefetch = 0 : i64, scratch_operands = 0 : i64, tpu.core_type = #tpu.core_type<tc>, window_params = [{transform_indices = @transform_0, window_bounds = array<i64: 8, 128>}, {pipeline_mode = #tpu.pipeline_mode<synchronous>, transform_indices = @transform_1, window_bounds = array<i64: 128, 768>}, {pipeline_mode = #tpu.pipeline_mode<synchronous>, transform_indices = @transform_2, window_bounds = array<i64: 1, 768>}, {pipeline_mode = #tpu.pipeline_mode<synchronous>, transform_indices = @transform_3, window_bounds = array<i64: 256, 256>}, {pipeline_mode = #tpu.pipeline_mode<synchronous>, transform_indices = @transform_4, window_bounds = array<i64: 1, 256>}, {pipeline_mode = #tpu.pipeline_mode<synchronous>, transform_indices = @transform_5, window_bounds = array<i64: 256, 128>}, {pipeline_mode = #tpu.pipeline_mode<synchronous>, transform_indices = @transform_6, window_bounds = array<i64: 1, 128>}, {transform_indices = @transform_7, window_bounds = array<i64: 8, 128>}]} {
    %c0 = arith.constant 0 : index
    %c0_0 = arith.constant 0 : index
    %0 = vector.load %arg1[%c0, %c0_0] : memref<8x128xbf16, #tpu.memory_space<vmem>>, vector<8x128xbf16>
    %c0_1 = arith.constant 0 : index
    %c0_2 = arith.constant 0 : index
    %1 = vector.load %arg2[%c0_1, %c0_2] : memref<128x768xbf16, #tpu.memory_space<vmem>>, vector<128x768xbf16>
    %cst = arith.constant dense<0.000000e+00> : vector<8x768xf32>
    %2 = tpu.matmul %0, %1, %cst {dimension_numbers = #tpu.dot_dimension_numbers<[1], [0], [0], [1], [0, 0, 1, 1], [], []>} : vector<8x128xbf16>, vector<128x768xbf16>, vector<8x768xf32> -> vector<8x768xf32>
    %c0_3 = arith.constant 0 : index
    %c0_4 = arith.constant 0 : index
    %3 = vector.load %arg3[%c0_3, %c0_4] : memref<1x768xf32, #tpu.memory_space<vmem>>, vector<1x768xf32>
    %4 = vector.broadcast %3 : vector<1x768xf32> to vector<8x768xf32>
    %5 = arith.addf %2, %4 : vector<8x768xf32>
    %6 = vector.extract_strided_slice %5 {offsets = [0, 0], sizes = [8, 256], strides = [1, 1]} : vector<8x768xf32> to vector<8x256xf32>
    %7 = arith.negf %6 : vector<8x256xf32>
    %8 = math.exp %7 : vector<8x256xf32>
    %cst_5 = arith.constant 1.000000e+00 : f32
    %9 = vector.broadcast %cst_5 : f32 to vector<8x256xf32>
    %10 = arith.addf %9, %8 : vector<8x256xf32>
    %11 = arith.divf %9, %10 : vector<8x256xf32>
    %12 = vector.extract_strided_slice %5 {offsets = [0, 256], sizes = [8, 256], strides = [1, 1]} : vector<8x768xf32> to vector<8x256xf32>
    %13 = math.tanh %12 : vector<8x256xf32>
    %14 = vector.extract_strided_slice %5 {offsets = [0, 512], sizes = [8, 256], strides = [1, 1]} : vector<8x768xf32> to vector<8x256xf32>
    %15 = arith.negf %14 : vector<8x256xf32>
    %16 = math.exp %15 : vector<8x256xf32>
    %cst_6 = arith.constant 1.000000e+00 : f32
    %17 = vector.broadcast %cst_6 : f32 to vector<8x256xf32>
    %18 = arith.addf %17, %16 : vector<8x256xf32>
    %19 = arith.divf %17, %18 : vector<8x256xf32>
    %20 = arith.mulf %11, %13 : vector<8x256xf32>
    %21 = math.tanh %20 : vector<8x256xf32>
    %22 = arith.mulf %19, %21 : vector<8x256xf32>
    %23 = arith.truncf %22 : vector<8x256xf32> to vector<8x256xbf16>
    %c0_7 = arith.constant 0 : index
    %c0_8 = arith.constant 0 : index
    %24 = vector.load %arg4[%c0_7, %c0_8] : memref<256x256xbf16, #tpu.memory_space<vmem>>, vector<256x256xbf16>
    %cst_9 = arith.constant dense<0.000000e+00> : vector<8x256xf32>
    %25 = tpu.matmul %23, %24, %cst_9 {dimension_numbers = #tpu.dot_dimension_numbers<[1], [0], [0], [1], [0, 0, 1, 1], [], []>} : vector<8x256xbf16>, vector<256x256xbf16>, vector<8x256xf32> -> vector<8x256xf32>
    %c0_10 = arith.constant 0 : index
    %c0_11 = arith.constant 0 : index
    %26 = vector.load %arg5[%c0_10, %c0_11] : memref<1x256xf32, #tpu.memory_space<vmem>>, vector<1x256xf32>
    %27 = vector.broadcast %26 : vector<1x256xf32> to vector<8x256xf32>
    %28 = arith.addf %25, %27 : vector<8x256xf32>
    %cst_12 = arith.constant 0.000000e+00 : f32
    %29 = vector.broadcast %cst_12 : f32 to vector<8x256xf32>
    %30 = arith.maximumf %28, %29 : vector<8x256xf32>
    %31 = arith.truncf %30 : vector<8x256xf32> to vector<8x256xbf16>
    %c0_13 = arith.constant 0 : index
    %c0_14 = arith.constant 0 : index
    %32 = vector.load %arg6[%c0_13, %c0_14] : memref<256x128xbf16, #tpu.memory_space<vmem>>, vector<256x128xbf16>
    %cst_15 = arith.constant dense<0.000000e+00> : vector<8x128xf32>
    %33 = tpu.matmul %31, %32, %cst_15 {dimension_numbers = #tpu.dot_dimension_numbers<[1], [0], [0], [1], [0, 0, 1, 1], [], []>} : vector<8x256xbf16>, vector<256x128xbf16>, vector<8x128xf32> -> vector<8x128xf32>
    %c0_16 = arith.constant 0 : index
    %c0_17 = arith.constant 0 : index
    %34 = vector.load %arg7[%c0_16, %c0_17] : memref<1x128xf32, #tpu.memory_space<vmem>>, vector<1x128xf32>
    %35 = vector.broadcast %34 : vector<1x128xf32> to vector<8x128xf32>
    %36 = arith.addf %33, %35 : vector<8x128xf32>
    %c0_18 = arith.constant 0 : index
    %c0_19 = arith.constant 0 : index
    %37 = vector.load %arg8[%c0_18, %c0_19] : memref<8x128xf32, #tpu.memory_space<vmem>>, vector<8x128xf32>
    tpu.vector_store %arg8[%c0_18, %c0_19], %36 {strides = array<i32>} : memref<8x128xf32, #tpu.memory_space<vmem>>, vector<8x128xf32>,
    return
  }
  func.func @transform_0(%arg0: i32) -> (i32, i32) {
    %c0_i32 = arith.constant 0 : i32
    %c0_i32_0 = arith.constant 0 : i32
    return %arg0, %c0_i32 : i32, i32
  }
  func.func @transform_1(%arg0: i32) -> (i32, i32) {
    %c0_i32 = arith.constant 0 : i32
    %c0_i32_0 = arith.constant 0 : i32
    %c0_i32_1 = arith.constant 0 : i32
    return %c0_i32, %c0_i32_0 : i32, i32
  }
  func.func @transform_2(%arg0: i32) -> (i32, i32) {
    %c0_i32 = arith.constant 0 : i32
    %c0_i32_0 = arith.constant 0 : i32
    %c0_i32_1 = arith.constant 0 : i32
    return %c0_i32, %c0_i32_0 : i32, i32
  }
  func.func @transform_3(%arg0: i32) -> (i32, i32) {
    %c0_i32 = arith.constant 0 : i32
    %c0_i32_0 = arith.constant 0 : i32
    %c0_i32_1 = arith.constant 0 : i32
    return %c0_i32, %c0_i32_0 : i32, i32
  }
  func.func @transform_4(%arg0: i32) -> (i32, i32) {
    %c0_i32 = arith.constant 0 : i32
    %c0_i32_0 = arith.constant 0 : i32
    %c0_i32_1 = arith.constant 0 : i32
    return %c0_i32, %c0_i32_0 : i32, i32
  }
  func.func @transform_5(%arg0: i32) -> (i32, i32) {
    %c0_i32 = arith.constant 0 : i32
    %c0_i32_0 = arith.constant 0 : i32
    %c0_i32_1 = arith.constant 0 : i32
    return %c0_i32, %c0_i32_0 : i32, i32
  }
  func.func @transform_6(%arg0: i32) -> (i32, i32) {
    %c0_i32 = arith.constant 0 : i32
    %c0_i32_0 = arith.constant 0 : i32
    %c0_i32_1 = arith.constant 0 : i32
    return %c0_i32, %c0_i32_0 : i32, i32
  }
  func.func @transform_7(%arg0: i32) -> (i32, i32) {
    %c0_i32 = arith.constant 0 : i32
    %c0_i32_0 = arith.constant 0 : i32
    return %arg0, %c0_i32 : i32, i32
  }
}

</mosaic_0001>

<llo_original>
// kernel: tpu_custom_call.1
$region0: #{tpu_custom_call.1}
  #allocation0 [shape = 'u32[]', space=smem, size = 0x4, offset = 0x4, fixed_abs, tag = 'smem constant byte address 0x4 - core index']
  #allocation1 [shape = 'u32[72,128]{1,0:T(1,128)}', space=vmem, size = 0x9000, scoped, tag = 'internal scratch']
  %s0 = inlined_call_operand.hbm [shape: bf16[8,128], index: 0, kind: input, shape index: {}]
  %s1 = inlined_call_operand.hbm [shape: bf16[128,768], index: 1, kind: input, shape index: {}]
  %s2 = inlined_call_operand.hbm [shape: f32[1,768], index: 2, kind: input, shape index: {}]
  %s3 = inlined_call_operand.hbm [shape: bf16[256,256], index: 3, kind: input, shape index: {}]
  %s4 = inlined_call_operand.vmem [shape: f32[1,256], index: 4, kind: input, shape index: {}]
  %s5 = inlined_call_operand.hbm [shape: bf16[256,128], index: 5, kind: input, shape index: {}]
  %s6 = inlined_call_operand.vmem [shape: f32[1,128], index: 6, kind: input, shape index: {}]
  %s7 = inlined_call_operand.hbm [shape: f32[8,128], index: 7, kind: output, shape index: {}]
  %s8 = sld [smem:[#allocation0]]
  $region58: #{tpu_custom_call.1} parent=0
    _
  %s10 = ssub.s32 1, %s8
  %s11 = scalar_select 0, %s10, %s8
  $region1: #{tpu_custom_call.1} parent=0
    #allocation2 [shape = 'u8[2048]{0}', space=vmem, size = 0x800, scoped, tag = 'input window, operand 0, single buffered']
    #allocation3 [shape = 's32[1]{0}', space=sflag, size = 0x4, scoped, tag = 'scoped memory for tpu_custom_call.1']
    #allocation4 [shape = 's32[1]{0}', space=sflag, size = 0x4, scoped, tag = 'scoped memory for tpu_custom_call.1']
    #allocation5 [shape = 'u8[196608]{0}', space=vmem, size = 0x30000, scoped, tag = 'input window, operand 1, single buffered']
    #allocation6 [shape = 's32[1]{0}', space=sflag, size = 0x4, scoped, tag = 'scoped memory for tpu_custom_call.1']
    #allocation7 [shape = 'u8[3072]{0}', space=vmem, size = 0xc00, scoped, tag = 'input window, operand 2, single buffered']
    #allocation8 [shape = 'u8[131072]{0}', space=vmem, size = 0x20000, scoped, tag = 'input window, operand 3, single buffered']
    #allocation9 [shape = 's32[1]{0}', space=sflag, size = 0x4, scoped, tag = 'scoped memory for tpu_custom_call.1']
    #allocation10 [shape = 'u8[65536]{0}', space=vmem, size = 0x10000, scoped, tag = 'input window, operand 5, single buffered']
    #allocation11 [shape = 'u8[4096]{0}', space=vmem, size = 0x1000, scoped, tag = 'output window, operand 0, single buffered']
    %12 = vsyncpa [#allocation3], 0
    %13 = vsyncpa [#allocation6], 0
    %14 = vsyncpa [#allocation9], 0
    %15 = vsyncpa [#allocation4], 0
    // Predicated region
    $region2: #{tpu_custom_call.1} parent=1 // pred_check
      _
    $region3: #{tpu_custom_call.1} parent=1 // pred_check_branch
      %17 = sbr.rel (0) target = $region5
    $region4: #{tpu_custom_call.1} parent=1 // pred_region
      %19 = vsyncadd [#allocation3], 0
      %s21 = sshll.u32 %s0, 4
      %s22 = int_to_ptr.hbm [resolvable:$true] %s21
      %s23 = sshll.u32 [#allocation2], 4
      %s24 = int_to_ptr.vmem [resolvable:$true] %s23
      %26 = dma.hbm_to_vmem [thread:$0]  %s22, 64, %s24, [#allocation3]
    $region5: #{tpu_custom_call.1} parent=1 // pred_fallthru
      _
    // Predicated region
    $region6: #{tpu_custom_call.1} parent=1 // pred_check
      _
    $region7: #{tpu_custom_call.1} parent=1 // pred_check_branch
      %28 = sbr.rel (0) target = $region9
    $region8: #{tpu_custom_call.1} parent=1 // pred_region
      %30 = vsyncadd [#allocation6], 0
      %s31 = sshll.u32 %s1, 4
      %s32 = int_to_ptr.hbm [resolvable:$true] %s31
      %s33 = sshll.u32 [#allocation5], 4
      %s34 = int_to_ptr.vmem [resolvable:$true] %s33
      %39 = dma.hbm_to_vmem [thread:$0]  %s32, 6144, %s34, [#allocation6], 384, 384, 24
    $region9: #{tpu_custom_call.1} parent=1 // pred_fallthru
      _
    // Predicated region
    $region10: #{tpu_custom_call.1} parent=1 // pred_check
      _
    $region11: #{tpu_custom_call.1} parent=1 // pred_check_branch
      %41 = sbr.rel (0) target = $region13
    $region12: #{tpu_custom_call.1} parent=1 // pred_region
      %43 = vsyncadd [#allocation6], 0
      %s45 = sshll.u32 %s2, 4
      %s46 = int_to_ptr.hbm [resolvable:$true] %s45
      %s47 = sshll.u32 [#allocation7], 4
      %s48 = int_to_ptr.vmem [resolvable:$true] %s47
      %50 = dma.hbm_to_vmem [thread:$0]  %s46, 96, %s48, [#allocation6]
    $region13: #{tpu_custom_call.1} parent=1 // pred_fallthru
      _
    // Predicated region
    $region14: #{tpu_custom_call.1} parent=1 // pred_check
      _
    $region15: #{tpu_custom_call.1} parent=1 // pred_check_branch
      %52 = sbr.rel (0) target = $region17
    $region16: #{tpu_custom_call.1} parent=1 // pred_region
      %54 = vsyncadd [#allocation9], 0
      %s55 = sshll.u32 %s3, 4
      %s56 = int_to_ptr.hbm [resolvable:$true] %s55
      %s57 = sshll.u32 [#allocation8], 4
      %s58 = int_to_ptr.vmem [resolvable:$true] %s57
      %63 = dma.hbm_to_vmem [thread:$0]  %s56, 4096, %s58, [#allocation9], 128, 128, 8
    $region17: #{tpu_custom_call.1} parent=1 // pred_fallthru
      _
    // Predicated region
    $region18: #{tpu_custom_call.1} parent=1 // pred_check
      _
    $region19: #{tpu_custom_call.1} parent=1 // pred_check_branch
      %65 = sbr.rel (0) target = $region21
    $region20: #{tpu_custom_call.1} parent=1 // pred_region
      _
    $region21: #{tpu_custom_call.1} parent=1 // pred_fallthru
      _
    // Predicated region
    $region22: #{tpu_custom_call.1} parent=1 // pred_check
      _
    $region23: #{tpu_custom_call.1} parent=1 // pred_check_branch
      %67 = sbr.rel (0) target = $region25
    $region24: #{tpu_custom_call.1} parent=1 // pred_region
      %69 = vsyncadd [#allocation9], 0
      %s70 = sshll.u32 %s5, 4
      %s71 = int_to_ptr.hbm [resolvable:$true] %s70
      %s72 = sshll.u32 [#allocation10], 4
      %s73 = int_to_ptr.vmem [resolvable:$true] %s72
      %78 = dma.hbm_to_vmem [thread:$0]  %s71, 2048, %s73, [#allocation9], 64, 64, 4
    $region25: #{tpu_custom_call.1} parent=1 // pred_fallthru
      _
    // Predicated region
    $region26: #{tpu_custom_call.1} parent=1 // pred_check
      _
    $region27: #{tpu_custom_call.1} parent=1 // pred_check_branch
      %80 = sbr.rel (0) target = $region29
    $region28: #{tpu_custom_call.1} parent=1 // pred_region
      _
    $region29: #{tpu_custom_call.1} parent=1 // pred_fallthru
      _
    // Predicated region
    $region30: #{tpu_custom_call.1} parent=1 // pred_check
      _
    $region31: #{tpu_custom_call.1} parent=1 // pred_check_branch
      %82 = sbr.rel (0) target = $region33
    $region32: #{tpu_custom_call.1} parent=1 // pred_region
      %84 = dma.done [#allocation3], 64
    $region33: #{tpu_custom_call.1} parent=1 // pred_fallthru
      _
    // Predicated region
    $region34: #{tpu_custom_call.1} parent=1 // pred_check
      _
    $region35: #{tpu_custom_call.1} parent=1 // pred_check_branch
      %86 = sbr.rel (0) target = $region37
    $region36: #{tpu_custom_call.1} parent=1 // pred_region
      %88 = dma.done [#allocation6], 6144
    $region37: #{tpu_custom_call.1} parent=1 // pred_fallthru
      _
    // Predicated region
    $region38: #{tpu_custom_call.1} parent=1 // pred_check
      _
    $region39: #{tpu_custom_call.1} parent=1 // pred_check_branch
      %90 = sbr.rel (0) target = $region41
    $region40: #{tpu_custom_call.1} parent=1 // pred_region
      %92 = dma.done [#allocation6], 96
    $region41: #{tpu_custom_call.1} parent=1 // pred_fallthru
      _
    // Predicated region
    $region42: #{tpu_custom_call.1} parent=1 // pred_check
      _
    $region43: #{tpu_custom_call.1} parent=1 // pred_check_branch
      %94 = sbr.rel (0) target = $region45
    $region44: #{tpu_custom_call.1} parent=1 // pred_region
      %96 = dma.done [#allocation9], 4096
    $region45: #{tpu_custom_call.1} parent=1 // pred_fallthru
      _
    // Predicated region
    $region46: #{tpu_custom_call.1} parent=1 // pred_check
      _
    $region47: #{tpu_custom_call.1} parent=1 // pred_check_branch
      %98 = sbr.rel (0) target = $region49
    $region48: #{tpu_custom_call.1} parent=1 // pred_region
      %100 = dma.done [#allocation9], 2048
    $region49: #{tpu_custom_call.1} parent=1 // pred_fallthru
      _
    %v101 = vld [vmem:[#allocation2] sm:$0xf]
    %v102 = vld [vmem:[#allocation5] sm:$0xff]
    %v103 = vld [vmem:[#allocation5 + $0x8] sm:$0xff]
    %v104 = vld [vmem:[#allocation5 + $0x10] sm:$0xff]
    %v105 = vld [vmem:[#allocation5 + $0x18] sm:$0xff]
    %v106 = vld [vmem:[#allocation5 + $0x20] sm:$0xff]
    %v107 = vld [vmem:[#allocation5 + $0x28] sm:$0xff]
    %v108 = vld [vmem:[#allocation5 + $0x30] sm:$0xff]
    %v109 = vld [vmem:[#allocation5 + $0x38] sm:$0xff]
    %v110 = vld [vmem:[#allocation5 + $0x40] sm:$0xff]
    %v111 = vld [vmem:[#allocation5 + $0x48] sm:$0xff]
    %v112 = vld [vmem:[#allocation5 + $0x50] sm:$0xff]
    %v113 = vld [vmem:[#allocation5 + $0x58] sm:$0xff]
    %v114 = vld [vmem:[#allocation5 + $0x60] sm:$0xff]
    %v115 = vld [vmem:[#allocation5 + $0x68] sm:$0xff]
    %v116 = vld [vmem:[#allocation5 + $0x70] sm:$0xff]
    %v117 = vld [vmem:[#allocation5 + $0x78] sm:$0xff]
    %v118 = vld [vmem:[#allocation5 + $0x80] sm:$0xff]
    %v119 = vld [vmem:[#allocation5 + $0x88] sm:$0xff]
    %v120 = vld [vmem:[#allocation5 + $0x90] sm:$0xff]
    %v121 = vld [vmem:[#allocation5 + $0x98] sm:$0xff]
    %v122 = vld [vmem:[#allocation5 + $0xa0] sm:$0xff]
    %v123 = vld [vmem:[#allocation5 + $0xa8] sm:$0xff]
    %v124 = vld [vmem:[#allocation5 + $0xb0] sm:$0xff]
    %v125 = vld [vmem:[#allocation5 + $0xb8] sm:$0xff]
    %v126 = vld [vmem:[#allocation5 + $0xc0] sm:$0xff]
    %v127 = vld [vmem:[#allocation5 + $0xc8] sm:$0xff]
    %v128 = vld [vmem:[#allocation5 + $0xd0] sm:$0xff]
    %v129 = vld [vmem:[#allocation5 + $0xd8] sm:$0xff]
    %v130 = vld [vmem:[#allocation5 + $0xe0] sm:$0xff]
    %v131 = vld [vmem:[#allocation5 + $0xe8] sm:$0xff]
    %v132 = vld [vmem:[#allocation5 + $0xf0] sm:$0xff]
    %v133 = vld [vmem:[#allocation5 + $0xf8] sm:$0xff]
    %v134 = vld [vmem:[#allocation5 + $0x100] sm:$0xff]
    %v135 = vld [vmem:[#allocation5 + $0x108] sm:$0xff]
    %v136 = vld [vmem:[#allocation5 + $0x110] sm:$0xff]
    %v137 = vld [vmem:[#allocation5 + $0x118] sm:$0xff]
    %v138 = vld [vmem:[#allocation5 + $0x120] sm:$0xff]
    %v139 = vld [vmem:[#allocation5 + $0x128] sm:$0xff]
    %v140 = vld [vmem:[#allocation5 + $0x130] sm:$0xff]
    %v141 = vld [vmem:[#allocation5 + $0x138] sm:$0xff]
    %v142 = vld [vmem:[#allocation5 + $0x140] sm:$0xff]
    %v143 = vld [vmem:[#allocation5 + $0x148] sm:$0xff]
    %v144 = vld [vmem:[#allocation5 + $0x150] sm:$0xff]
    %v145 = vld [vmem:[#allocation5 + $0x158] sm:$0xff]
    %v146 = vld [vmem:[#allocation5 + $0x160] sm:$0xff]
    %v147 = vld [vmem:[#allocation5 + $0x168] sm:$0xff]
    %v148 = vld [vmem:[#allocation5 + $0x170] sm:$0xff]
    %v149 = vld [vmem:[#allocation5 + $0x178] sm:$0xff]
    %v150 = vld [vmem:[#allocation7] sm:$0x3f]
    %v152 = vperm.slane %v150, 0
    %v153 = vperm.slane %v150, 1
    %v154 = vperm.slane %v150, 2
    %v155 = vperm.slane %v150, 3
    %v156 = vperm.slane %v150, 4
    %v157 = vperm.slane %v150, 5
    %v212 = vunpack.c.l.b16 %v102
    %v213 = vunpack.c.h.b16 %v102
    %v214 = vunpack.c.l.b16 %v103
    %v215 = vunpack.c.h.b16 %v103
    %v216 = vunpack.c.l.b16 %v104
    %v217 = vunpack.c.h.b16 %v104
    %v218 = vunpack.c.l.b16 %v105
    %v219 = vunpack.c.h.b16 %v105
    %v220 = vunpack.c.l.b16 %v106
    %v221 = vunpack.c.h.b16 %v106
    %v222 = vunpack.c.l.b16 %v107
    %v223 = vunpack.c.h.b16 %v107
    %v224 = vunpack.c.l.b16 %v108
    %v225 = vunpack.c.h.b16 %v108
    %v226 = vunpack.c.l.b16 %v109
    %v227 = vunpack.c.h.b16 %v109
    %v228 = vunpack.c.l.b16 %v110
    %v229 = vunpack.c.h.b16 %v110
    %v230 = vunpack.c.l.b16 %v111
    %v231 = vunpack.c.h.b16 %v111
    %v232 = vunpack.c.l.b16 %v112
    %v233 = vunpack.c.h.b16 %v112
    %v234 = vunpack.c.l.b16 %v113
    %v235 = vunpack.c.h.b16 %v113
    %v236 = vunpack.c.l.b16 %v114
    %v237 = vunpack.c.h.b16 %v114
    %v238 = vunpack.c.l.b16 %v115
    %v239 = vunpack.c.h.b16 %v115
    %v240 = vunpack.c.l.b16 %v116
    %v241 = vunpack.c.h.b16 %v116
    %v242 = vunpack.c.l.b16 %v117
    %v243 = vunpack.c.h.b16 %v117
    %v244 = vunpack.c.l.b16 %v118
    %v245 = vunpack.c.h.b16 %v118
    %v246 = vunpack.c.l.b16 %v119
    %v247 = vunpack.c.h.b16 %v119
    %v248 = vunpack.c.l.b16 %v120
    %v249 = vunpack.c.h.b16 %v120
    %v250 = vunpack.c.l.b16 %v121
    %v251 = vunpack.c.h.b16 %v121
    %v252 = vunpack.c.l.b16 %v122
    %v253 = vunpack.c.h.b16 %v122
    %v254 = vunpack.c.l.b16 %v123
    %v255 = vunpack.c.h.b16 %v123
    %v256 = vunpack.c.l.b16 %v124
    %v257 = vunpack.c.h.b16 %v124
    %v258 = vunpack.c.l.b16 %v125
    %v259 = vunpack.c.h.b16 %v125
    %v260 = vunpack.c.l.b16 %v126
    %v261 = vunpack.c.h.b16 %v126
    %v262 = vunpack.c.l.b16 %v127
    %v263 = vunpack.c.h.b16 %v127
    %v264 = vunpack.c.l.b16 %v128
    %v265 = vunpack.c.h.b16 %v128
    %v266 = vunpack.c.l.b16 %v129
    %v267 = vunpack.c.h.b16 %v129
    %v268 = vunpack.c.l.b16 %v130
    %v269 = vunpack.c.h.b16 %v130
    %v270 = vunpack.c.l.b16 %v131
    %v271 = vunpack.c.h.b16 %v131
    %v272 = vunpack.c.l.b16 %v132
    %v273 = vunpack.c.h.b16 %v132
    %v274 = vunpack.c.l.b16 %v133
    %v275 = vunpack.c.h.b16 %v133
    %v276 = vunpack.c.l.b16 %v134
    %v277 = vunpack.c.h.b16 %v134
    %v278 = vunpack.c.l.b16 %v135
    %v279 = vunpack.c.h.b16 %v135
    %v280 = vunpack.c.l.b16 %v136
    %v281 = vunpack.c.h.b16 %v136
    %v282 = vunpack.c.l.b16 %v137
    %v283 = vunpack.c.h.b16 %v137
    %v284 = vunpack.c.l.b16 %v138
    %v285 = vunpack.c.h.b16 %v138
    %v286 = vunpack.c.l.b16 %v139
    %v287 = vunpack.c.h.b16 %v139
    %v288 = vunpack.c.l.b16 %v140
    %v289 = vunpack.c.h.b16 %v140
    %v290 = vunpack.c.l.b16 %v141
    %v291 = vunpack.c.h.b16 %v141
    %v292 = vunpack.c.l.b16 %v142
    %v293 = vunpack.c.h.b16 %v142
    %v294 = vunpack.c.l.b16 %v143
    %v295 = vunpack.c.h.b16 %v143
    %v296 = vunpack.c.l.b16 %v144
    %v297 = vunpack.c.h.b16 %v144
    %v298 = vunpack.c.l.b16 %v145
    %v299 = vunpack.c.h.b16 %v145
    %v300 = vunpack.c.l.b16 %v146
    %v301 = vunpack.c.h.b16 %v146
    %v302 = vunpack.c.l.b16 %v147
    %v303 = vunpack.c.h.b16 %v147
    %v304 = vunpack.c.l.b16 %v148
    %v305 = vunpack.c.h.b16 %v148
    %v306 = vunpack.c.l.b16 %v149
    %v307 = vunpack.c.h.b16 %v149
    %v308 = vpack.c.b16 %v218, %v212
    %v309 = vpack.c.b16 %v219, %v213
    %v310 = vpack.c.b16 %v220, %v214
    %v311 = vpack.c.b16 %v221, %v215
    %v312 = vpack.c.b16 %v222, %v216
    %v313 = vpack.c.b16 %v223, %v217
    %v314 = vpack.c.b16 %v230, %v224
    %v315 = vpack.c.b16 %v231, %v225
    %v316 = vpack.c.b16 %v232, %v226
    %v317 = vpack.c.b16 %v233, %v227
    %v318 = vpack.c.b16 %v234, %v228
    %v319 = vpack.c.b16 %v235, %v229
    %v320 = vpack.c.b16 %v242, %v236
    %v321 = vpack.c.b16 %v243, %v237
    %v322 = vpack.c.b16 %v244, %v238
    %v323 = vpack.c.b16 %v245, %v239
    %v324 = vpack.c.b16 %v246, %v240
    %v325 = vpack.c.b16 %v247, %v241
    %v326 = vpack.c.b16 %v254, %v248
    %v327 = vpack.c.b16 %v255, %v249
    %v328 = vpack.c.b16 %v256, %v250
    %v329 = vpack.c.b16 %v257, %v251
    %v330 = vpack.c.b16 %v258, %v252
    %v331 = vpack.c.b16 %v259, %v253
    %v332 = vpack.c.b16 %v266, %v260
    %v333 = vpack.c.b16 %v267, %v261
    %v334 = vpack.c.b16 %v268, %v262
    %v335 = vpack.c.b16 %v269, %v263
    %v336 = vpack.c.b16 %v270, %v264
    %v337 = vpack.c.b16 %v271, %v265
    %v338 = vpack.c.b16 %v278, %v272
    %v339 = vpack.c.b16 %v279, %v273
    %v340 = vpack.c.b16 %v280, %v274
    %v341 = vpack.c.b16 %v281, %v275
    %v342 = vpack.c.b16 %v282, %v276
    %v343 = vpack.c.b16 %v283, %v277
    %v344 = vpack.c.b16 %v290, %v284
    %v345 = vpack.c.b16 %v291, %v285
    %v346 = vpack.c.b16 %v292, %v286
    %v347 = vpack.c.b16 %v293, %v287
    %v348 = vpack.c.b16 %v294, %v288
    %v349 = vpack.c.b16 %v295, %v289
    %v350 = vpack.c.b16 %v302, %v296
    %v351 = vpack.c.b16 %v303, %v297
    %v352 = vpack.c.b16 %v304, %v298
    %v353 = vpack.c.b16 %v305, %v299
    %v354 = vpack.c.b16 %v306, %v300
    %v355 = vpack.c.b16 %v307, %v301
    %404 = vmatpush.bf16.msra.mxu0 %v350
    %405 = vmatpush.bf16.msra.mxu0 %v344
    %406 = vmatpush.bf16.msra.mxu0 %v338
    %407 = vmatpush.bf16.msra.mxu0 %v332
    %408 = vmatpush.bf16.msra.mxu0 %v326
    %409 = vmatpush.bf16.msra.mxu0 %v320
    %410 = vmatpush.bf16.msra.mxu0 %v314
    %411 = vmatpush.bf16.msra.mxu0 %v308
    %412 = vmatmul.bf16.gmra.mxu0 %v101
    %v413 = vpop.f32.mrf.mxu0
    %v414 = vadd.f32 %v152, %v413
    %v415 = vpop.f32.mrf.mxu0
    %416 = vdwg.mxu0
    %417 = vmatpush.bf16.msra.mxu0 %v351
    %418 = vmatpush.bf16.msra.mxu0 %v345
    %419 = vmatpush.bf16.msra.mxu0 %v339
    %420 = vmatpush.bf16.msra.mxu0 %v333
    %421 = vmatpush.bf16.msra.mxu0 %v327
    %422 = vmatpush.bf16.msra.mxu0 %v321
    %423 = vmatpush.bf16.msra.mxu0 %v315
    %424 = vmatpush.bf16.msra.mxu0 %v309
    %425 = vmatmul.bf16.gmra.mxu0 %v101
    %v426 = vpop.f32.mrf.mxu0
    %v427 = vadd.f32 %v153, %v426
    %v428 = vpop.f32.mrf.mxu0
    %429 = vdwg.mxu0
    %430 = vmatpush.bf16.msra.mxu0 %v352
    %431 = vmatpush.bf16.msra.mxu0 %v346
    %432 = vmatpush.bf16.msra.mxu0 %v340
    %433 = vmatpush.bf16.msra.mxu0 %v334
    %434 = vmatpush.bf16.msra.mxu0 %v328
    %435 = vmatpush.bf16.msra.mxu0 %v322
    %436 = vmatpush.bf16.msra.mxu0 %v316
    %437 = vmatpush.bf16.msra.mxu0 %v310
    %438 = vmatmul.bf16.gmra.mxu0 %v101
    %v439 = vpop.f32.mrf.mxu0
    %v440 = vadd.f32 %v154, %v439
    %v441 = vpop.f32.mrf.mxu0
    %442 = vdwg.mxu0
    %443 = vmatpush.bf16.msra.mxu0 %v353
    %444 = vmatpush.bf16.msra.mxu0 %v347
    %445 = vmatpush.bf16.msra.mxu0 %v341
    %446 = vmatpush.bf16.msra.mxu0 %v335
    %447 = vmatpush.bf16.msra.mxu0 %v329
    %448 = vmatpush.bf16.msra.mxu0 %v323
    %449 = vmatpush.bf16.msra.mxu0 %v317
    %450 = vmatpush.bf16.msra.mxu0 %v311
    %451 = vmatmul.bf16.gmra.mxu0 %v101
    %v452 = vpop.f32.mrf.mxu0
    %v453 = vadd.f32 %v155, %v452
    %v454 = vpop.f32.mrf.mxu0
    %455 = vdwg.mxu0
    %456 = vmatpush.bf16.msra.mxu0 %v354
    %457 = vmatpush.bf16.msra.mxu0 %v348
    %458 = vmatpush.bf16.msra.mxu0 %v342
    %459 = vmatpush.bf16.msra.mxu0 %v336
    %460 = vmatpush.bf16.msra.mxu0 %v330
    %461 = vmatpush.bf16.msra.mxu0 %v324
    %462 = vmatpush.bf16.msra.mxu0 %v318
    %463 = vmatpush.bf16.msra.mxu0 %v312
    %464 = vmatmul.bf16.gmra.mxu0 %v101
    %v465 = vpop.f32.mrf.mxu0
    %v466 = vadd.f32 %v156, %v465
    %v467 = vpop.f32.mrf.mxu0
    %468 = vdwg.mxu0
    %469 = vmatpush.bf16.msra.mxu0 %v355
    %470 = vmatpush.bf16.msra.mxu0 %v349
    %471 = vmatpush.bf16.msra.mxu0 %v343
    %472 = vmatpush.bf16.msra.mxu0 %v337
    %473 = vmatpush.bf16.msra.mxu0 %v331
    %474 = vmatpush.bf16.msra.mxu0 %v325
    %475 = vmatpush.bf16.msra.mxu0 %v319
    %476 = vmatpush.bf16.msra.mxu0 %v313
    %477 = vmatmul.bf16.gmra.mxu0 %v101
    %v478 = vpop.f32.mrf.mxu0
    %v479 = vadd.f32 %v157, %v478
    %v480 = vpop.f32.mrf.mxu0
    %481 = vdwg.mxu0
    %v482 = vxor.u32 %v414, 2147483648
    %v483 = vxor.u32 %v427, 2147483648
    %v484 = vmul.f32 %v482, 1.442695
    %v485 = vpow.pop %v484
    %v486 = vmul.f32 %v483, 1.442695
    %v487 = vpow.pop %v486
    %v488 = vadd.f32 %v485, 1.0
    %v489 = vadd.f32 %v487, 1.0
    %v490 = vrcp.pop %v488
    %v491 = vmul.f32 %v488, %v490
    %v492 = vsub.f32 1.0, %v491
    %v493 = vmul.f32 %v490, %v492
    %v494 = vadd.f32 %v490, %v493
    %vm495 = vweird.f32 %v488
    %vm496 = vweird.f32 %v490
    %vm497 = vmor %vm495, %vm496
    %v498 = vsel %vm497, %v490, %v494
    %v499 = vand.u32 2147483647, %v488
    %vm500 = vcmp.eq.f32.partialorder %v499, 8.507059e+37
    %v501 = vand.u32 %v488, 2147483648
    %v502 = vor.u32 1.1754944e-38, %v501
    %v503 = vsel %vm500, %v502, %v498
    %v504 = vmul.f32 1.0, %v503
    %v505 = vrcp.pop %v489
    %v506 = vmul.f32 %v489, %v505
    %v507 = vsub.f32 1.0, %v506
    %v508 = vmul.f32 %v505, %v507
    %v509 = vadd.f32 %v505, %v508
    %vm510 = vweird.f32 %v489
    %vm511 = vweird.f32 %v505
    %vm512 = vmor %vm510, %vm511
    %v513 = vsel %vm512, %v505, %v509
    %v514 = vand.u32 2147483647, %v489
    %vm515 = vcmp.eq.f32.partialorder %v514, 8.507059e+37
    %v516 = vand.u32 %v489, 2147483648
    %v517 = vor.u32 1.1754944e-38, %v516
    %v518 = vsel %vm515, %v517, %v513
    %v519 = vmul.f32 1.0, %v518
    %v520 = vtanh.pop %v440
    %v521 = vtanh.pop %v453
    %v522 = vxor.u32 %v466, 2147483648
    %v523 = vxor.u32 %v479, 2147483648
    %v524 = vmul.f32 %v522, 1.442695
    %v525 = vpow.pop %v524
    %v526 = vmul.f32 %v523, 1.442695
    %v527 = vpow.pop %v526
    %v528 = vadd.f32 %v525, 1.0
    %v529 = vadd.f32 %v527, 1.0
    %v530 = vrcp.pop %v528
    %v531 = vmul.f32 %v528, %v530
    %v532 = vsub.f32 1.0, %v531
    %v533 = vmul.f32 %v530, %v532
    %v534 = vadd.f32 %v530, %v533
    %vm535 = vweird.f32 %v528
    %vm536 = vweird.f32 %v530
    %vm537 = vmor %vm535, %vm536
    %v538 = vsel %vm537, %v530, %v534
    %v539 = vand.u32 2147483647, %v528
    %vm540 = vcmp.eq.f32.partialorder %v539, 8.507059e+37
    %v541 = vand.u32 %v528, 2147483648
    %v542 = vor.u32 1.1754944e-38, %v541
    %v543 = vsel %vm540, %v542, %v538
    %v544 = vmul.f32 1.0, %v543
    %v545 = vrcp.pop %v529
    %v546 = vmul.f32 %v529, %v545
    %v547 = vsub.f32 1.0, %v546
    %v548 = vmul.f32 %v545, %v547
    %v549 = vadd.f32 %v545, %v548
    %vm550 = vweird.f32 %v529
    %vm551 = vweird.f32 %v545
    %vm552 = vmor %vm550, %vm551
    %v553 = vsel %vm552, %v545, %v549
    %v554 = vand.u32 2147483647, %v529
    %vm555 = vcmp.eq.f32.partialorder %v554, 8.507059e+37
    %v556 = vand.u32 %v529, 2147483648
    %v557 = vor.u32 1.1754944e-38, %v556
    %v558 = vsel %vm555, %v557, %v553
    %v559 = vmul.f32 1.0, %v558
    %v560 = vmul.f32 %v504, %v520
    %v561 = vmul.f32 %v519, %v521
    %v562 = vtanh.pop %v560
    %v563 = vtanh.pop %v561
    %v564 = vmul.f32 %v544, %v562
    %v565 = vmul.f32 %v559, %v563
    %v566 = vpack.c.bf16 %v564, %v564
    %v567 = vpack.c.bf16 %v565, %v565
    %v568 = vld [vmem:[#allocation8] sm:$0xff]
    %v569 = vld [vmem:[#allocation8 + $0x8] sm:$0xff]
    %v570 = vld [vmem:[#allocation8 + $0x10] sm:$0xff]
    %v571 = vld [vmem:[#allocation8 + $0x18] sm:$0xff]
    %v572 = vld [vmem:[#allocation8 + $0x20] sm:$0xff]
    %v573 = vld [vmem:[#allocation8 + $0x28] sm:$0xff]
    %v574 = vld [vmem:[#allocation8 + $0x30] sm:$0xff]
    %v575 = vld [vmem:[#allocation8 + $0x38] sm:$0xff]
    %v576 = vld [vmem:[#allocation8 + $0x40] sm:$0xff]
    %v577 = vld [vmem:[#allocation8 + $0x48] sm:$0xff]
    %v578 = vld [vmem:[#allocation8 + $0x50] sm:$0xff]
    %v579 = vld [vmem:[#allocation8 + $0x58] sm:$0xff]
    %v580 = vld [vmem:[#allocation8 + $0x60] sm:$0xff]
    %v581 = vld [vmem:[#allocation8 + $0x68] sm:$0xff]
    %v582 = vld [vmem:[#allocation8 + $0x70] sm:$0xff]
    %v583 = vld [vmem:[#allocation8 + $0x78] sm:$0xff]
    %v584 = vld [vmem:[#allocation8 + $0x80] sm:$0xff]
    %v585 = vld [vmem:[#allocation8 + $0x88] sm:$0xff]
    %v586 = vld [vmem:[#allocation8 + $0x90] sm:$0xff]
    %v587 = vld [vmem:[#allocation8 + $0x98] sm:$0xff]
    %v588 = vld [vmem:[#allocation8 + $0xa0] sm:$0xff]
    %v589 = vld [vmem:[#allocation8 + $0xa8] sm:$0xff]
    %v590 = vld [vmem:[#allocation8 + $0xb0] sm:$0xff]
    %v591 = vld [vmem:[#allocation8 + $0xb8] sm:$0xff]
    %v592 = vld [vmem:[#allocation8 + $0xc0] sm:$0xff]
    %v593 = vld [vmem:[#allocation8 + $0xc8] sm:$0xff]
    %v594 = vld [vmem:[#allocation8 + $0xd0] sm:$0xff]
    %v595 = vld [vmem:[#allocation8 + $0xd8] sm:$0xff]
    %v596 = vld [vmem:[#allocation8 + $0xe0] sm:$0xff]
    %v597 = vld [vmem:[#allocation8 + $0xe8] sm:$0xff]
    %v598 = vld [vmem:[#allocation8 + $0xf0] sm:$0xff]
    %v599 = vld [vmem:[#allocation8 + $0xf8] sm:$0xff]
    %v600 = vld [vmem:[%s4] sm:$0x3]
    %v602 = vperm.slane %v600, 0
    %v603 = vperm.slane %v600, 1
    %v638 = vunpack.c.l.b16 %v568
    %v639 = vunpack.c.h.b16 %v568
    %v640 = vunpack.c.l.b16 %v569
    %v641 = vunpack.c.h.b16 %v569
    %v642 = vunpack.c.l.b16 %v570
    %v643 = vunpack.c.h.b16 %v570
    %v644 = vunpack.c.l.b16 %v571
    %v645 = vunpack.c.h.b16 %v571
    %v646 = vunpack.c.l.b16 %v572
    %v647 = vunpack.c.h.b16 %v572
    %v648 = vunpack.c.l.b16 %v573
    %v649 = vunpack.c.h.b16 %v573
    %v650 = vunpack.c.l.b16 %v574
    %v651 = vunpack.c.h.b16 %v574
    %v652 = vunpack.c.l.b16 %v575
    %v653 = vunpack.c.h.b16 %v575
    %v654 = vunpack.c.l.b16 %v576
    %v655 = vunpack.c.h.b16 %v576
    %v656 = vunpack.c.l.b16 %v577
    %v657 = vunpack.c.h.b16 %v577
    %v658 = vunpack.c.l.b16 %v578
    %v659 = vunpack.c.h.b16 %v578
    %v660 = vunpack.c.l.b16 %v579
    %v661 = vunpack.c.h.b16 %v579
    %v662 = vunpack.c.l.b16 %v580
    %v663 = vunpack.c.h.b16 %v580
    %v664 = vunpack.c.l.b16 %v581
    %v665 = vunpack.c.h.b16 %v581
    %v666 = vunpack.c.l.b16 %v582
    %v667 = vunpack.c.h.b16 %v582
    %v668 = vunpack.c.l.b16 %v583
    %v669 = vunpack.c.h.b16 %v583
    %v670 = vunpack.c.l.b16 %v584
    %v671 = vunpack.c.h.b16 %v584
    %v672 = vunpack.c.l.b16 %v585
    %v673 = vunpack.c.h.b16 %v585
    %v674 = vunpack.c.l.b16 %v586
    %v675 = vunpack.c.h.b16 %v586
    %v676 = vunpack.c.l.b16 %v587
    %v677 = vunpack.c.h.b16 %v587
    %v678 = vunpack.c.l.b16 %v588
    %v679 = vunpack.c.h.b16 %v588
    %v680 = vunpack.c.l.b16 %v589
    %v681 = vunpack.c.h.b16 %v589
    %v682 = vunpack.c.l.b16 %v590
    %v683 = vunpack.c.h.b16 %v590
    %v684 = vunpack.c.l.b16 %v591
    %v685 = vunpack.c.h.b16 %v591
    %v686 = vunpack.c.l.b16 %v592
    %v687 = vunpack.c.h.b16 %v592
    %v688 = vunpack.c.l.b16 %v593
    %v689 = vunpack.c.h.b16 %v593
    %v690 = vunpack.c.l.b16 %v594
    %v691 = vunpack.c.h.b16 %v594
    %v692 = vunpack.c.l.b16 %v595
    %v693 = vunpack.c.h.b16 %v595
    %v694 = vunpack.c.l.b16 %v596
    %v695 = vunpack.c.h.b16 %v596
    %v696 = vunpack.c.l.b16 %v597
    %v697 = vunpack.c.h.b16 %v597
    %v698 = vunpack.c.l.b16 %v598
    %v699 = vunpack.c.h.b16 %v598
    %v700 = vunpack.c.l.b16 %v599
    %v701 = vunpack.c.h.b16 %v599
    %v702 = vpack.c.b16 %v640, %v638
    %v703 = vpack.c.b16 %v641, %v639
    %v704 = vpack.c.b16 %v644, %v642
    %v705 = vpack.c.b16 %v645, %v643
    %v706 = vpack.c.b16 %v648, %v646
    %v707 = vpack.c.b16 %v649, %v647
    %v708 = vpack.c.b16 %v652, %v650
    %v709 = vpack.c.b16 %v653, %v651
    %v710 = vpack.c.b16 %v656, %v654
    %v711 = vpack.c.b16 %v657, %v655
    %v712 = vpack.c.b16 %v660, %v658
    %v713 = vpack.c.b16 %v661, %v659
    %v714 = vpack.c.b16 %v664, %v662
    %v715 = vpack.c.b16 %v665, %v663
    %v716 = vpack.c.b16 %v668, %v666
    %v717 = vpack.c.b16 %v669, %v667
    %v718 = vpack.c.b16 %v672, %v670
    %v719 = vpack.c.b16 %v673, %v671
    %v720 = vpack.c.b16 %v676, %v674
    %v721 = vpack.c.b16 %v677, %v675
    %v722 = vpack.c.b16 %v680, %v678
    %v723 = vpack.c.b16 %v681, %v679
    %v724 = vpack.c.b16 %v684, %v682
    %v725 = vpack.c.b16 %v685, %v683
    %v726 = vpack.c.b16 %v688, %v686
    %v727 = vpack.c.b16 %v689, %v687
    %v728 = vpack.c.b16 %v692, %v690
    %v729 = vpack.c.b16 %v693, %v691
    %v730 = vpack.c.b16 %v696, %v694
    %v731 = vpack.c.b16 %v697, %v695
    %v732 = vpack.c.b16 %v700, %v698
    %v733 = vpack.c.b16 %v701, %v699
    %766 = vmatpush.bf16.msra.mxu0 %v716
    %767 = vmatpush.bf16.msra.mxu0 %v714
    %768 = vmatpush.bf16.msra.mxu0 %v712
    %769 = vmatpush.bf16.msra.mxu0 %v710
    %770 = vmatpush.bf16.msra.mxu0 %v708
    %771 = vmatpush.bf16.msra.mxu0 %v706
    %772 = vmatpush.bf16.msra.mxu0 %v704
    %773 = vmatpush.bf16.msra.mxu0 %v702
    %774 = vmatmul.bf16.gmra.mxu0 %v566
    %v775 = vpop.f32.mrf.mxu0
    %v776 = vadd.f32 %v602, %v775
    %v777 = vpop.f32.mrf.mxu0
    %778 = vdwg.mxu0
    %779 = vmatpush.bf16.msra.mxu0 %v732
    %780 = vmatpush.bf16.msra.mxu0 %v730
    %781 = vmatpush.bf16.msra.mxu0 %v728
    %782 = vmatpush.bf16.msra.mxu0 %v726
    %783 = vmatpush.bf16.msra.mxu0 %v724
    %784 = vmatpush.bf16.msra.mxu0 %v722
    %785 = vmatpush.bf16.msra.mxu0 %v720
    %786 = vmatpush.bf16.msra.mxu0 %v718
    %787 = vmatmul.bf16.gmra.mxu0 %v567
    %v788 = vpop.f32.mrf.mxu0
    %v789 = vadd.f32 %v776, %v788
    %v790 = vpop.f32.mrf.mxu0
    %791 = vdwg.mxu0
    %792 = vmatpush.bf16.msra.mxu0 %v717
    %793 = vmatpush.bf16.msra.mxu0 %v715
    %794 = vmatpush.bf16.msra.mxu0 %v713
    %795 = vmatpush.bf16.msra.mxu0 %v711
    %796 = vmatpush.bf16.msra.mxu0 %v709
    %797 = vmatpush.bf16.msra.mxu0 %v707
    %798 = vmatpush.bf16.msra.mxu0 %v705
    %799 = vmatpush.bf16.msra.mxu0 %v703
    %800 = vmatmul.bf16.gmra.mxu0 %v566
    %v801 = vpop.f32.mrf.mxu0
    %v802 = vadd.f32 %v603, %v801
    %v803 = vpop.f32.mrf.mxu0
    %804 = vdwg.mxu0
    %805 = vmatpush.bf16.msra.mxu0 %v733
    %806 = vmatpush.bf16.msra.mxu0 %v731
    %807 = vmatpush.bf16.msra.mxu0 %v729
    %808 = vmatpush.bf16.msra.mxu0 %v727
    %809 = vmatpush.bf16.msra.mxu0 %v725
    %810 = vmatpush.bf16.msra.mxu0 %v723
    %811 = vmatpush.bf16.msra.mxu0 %v721
    %812 = vmatpush.bf16.msra.mxu0 %v719
    %813 = vmatmul.bf16.gmra.mxu0 %v567
    %v814 = vpop.f32.mrf.mxu0
    %v815 = vadd.f32 %v802, %v814
    %v816 = vpop.f32.mrf.mxu0
    %817 = vdwg.mxu0
    %v818 = vmax.f32 %v789, 0.0
    %v819 = vmax.f32 %v815, 0.0
    %v820 = vpack.c.bf16 %v818, %v818
    %v821 = vpack.c.bf16 %v819, %v819
    %v822 = vld [vmem:[#allocation10] sm:$0xf]
    %v823 = vld [vmem:[#allocation10 + $0x4] sm:$0xf]
    %v824 = vld [vmem:[#allocation10 + $0x8] sm:$0xf]
    %v825 = vld [vmem:[#allocation10 + $0xc] sm:$0xf]
    %v826 = vld [vmem:[#allocation10 + $0x10] sm:$0xf]
    %v827 = vld [vmem:[#allocation10 + $0x14] sm:$0xf]
    %v828 = vld [vmem:[#allocation10 + $0x18] sm:$0xf]
    %v829 = vld [vmem:[#allocation10 + $0x1c] sm:$0xf]
    %v830 = vld [vmem:[#allocation10 + $0x20] sm:$0xf]
    %v831 = vld [vmem:[#allocation10 + $0x24] sm:$0xf]
    %v832 = vld [vmem:[#allocation10 + $0x28] sm:$0xf]
    %v833 = vld [vmem:[#allocation10 + $0x2c] sm:$0xf]
    %v834 = vld [vmem:[#allocation10 + $0x30] sm:$0xf]
    %v835 = vld [vmem:[#allocation10 + $0x34] sm:$0xf]
    %v836 = vld [vmem:[#allocation10 + $0x38] sm:$0xf]
    %v837 = vld [vmem:[#allocation10 + $0x3c] sm:$0xf]
    %v838 = vld [vmem:[#allocation10 + $0x40] sm:$0xf]
    %v839 = vld [vmem:[#allocation10 + $0x44] sm:$0xf]
    %v840 = vld [vmem:[#allocation10 + $0x48] sm:$0xf]
    %v841 = vld [vmem:[#allocation10 + $0x4c] sm:$0xf]
    %v842 = vld [vmem:[#allocation10 + $0x50] sm:$0xf]
    %v843 = vld [vmem:[#allocation10 + $0x54] sm:$0xf]
    %v844 = vld [vmem:[#allocation10 + $0x58] sm:$0xf]
    %v845 = vld [vmem:[#allocation10 + $0x5c] sm:$0xf]
    %v846 = vld [vmem:[#allocation10 + $0x60] sm:$0xf]
    %v847 = vld [vmem:[#allocation10 + $0x64] sm:$0xf]
    %v848 = vld [vmem:[#allocation10 + $0x68] sm:$0xf]
    %v849 = vld [vmem:[#allocation10 + $0x6c] sm:$0xf]
    %v850 = vld [vmem:[#allocation10 + $0x70] sm:$0xf]
    %v851 = vld [vmem:[#allocation10 + $0x74] sm:$0xf]
    %v852 = vld [vmem:[#allocation10 + $0x78] sm:$0xf]
    %v853 = vld [vmem:[#allocation10 + $0x7c] sm:$0xf]
    %v854 = vld [vmem:[%s6] sm:$0x1]
    %v856 = vperm.slane %v854, 0
    %v890 = vunpack.c.l.b16 %v822
    %v891 = vunpack.c.l.b16 %v823
    %v892 = vunpack.c.l.b16 %v824
    %v893 = vunpack.c.l.b16 %v825
    %v894 = vunpack.c.l.b16 %v826
    %v895 = vunpack.c.l.b16 %v827
    %v896 = vunpack.c.l.b16 %v828
    %v897 = vunpack.c.l.b16 %v829
    %v898 = vunpack.c.l.b16 %v830
    %v899 = vunpack.c.l.b16 %v831
    %v900 = vunpack.c.l.b16 %v832
    %v901 = vunpack.c.l.b16 %v833
    %v902 = vunpack.c.l.b16 %v834
    %v903 = vunpack.c.l.b16 %v835
    %v904 = vunpack.c.l.b16 %v836
    %v905 = vunpack.c.l.b16 %v837
    %v906 = vunpack.c.l.b16 %v838
    %v907 = vunpack.c.l.b16 %v839
    %v908 = vunpack.c.l.b16 %v840
    %v909 = vunpack.c.l.b16 %v841
    %v910 = vunpack.c.l.b16 %v842
    %v911 = vunpack.c.l.b16 %v843
    %v912 = vunpack.c.l.b16 %v844
    %v913 = vunpack.c.l.b16 %v845
    %v914 = vunpack.c.l.b16 %v846
    %v915 = vunpack.c.l.b16 %v847
    %v916 = vunpack.c.l.b16 %v848
    %v917 = vunpack.c.l.b16 %v849
    %v918 = vunpack.c.l.b16 %v850
    %v919 = vunpack.c.l.b16 %v851
    %v920 = vunpack.c.l.b16 %v852
    %v921 = vunpack.c.l.b16 %v853
    %v922 = vpack.c.b16 %v891, %v890
    %v923 = vpack.c.b16 %v893, %v892
    %v924 = vpack.c.b16 %v895, %v894
    %v925 = vpack.c.b16 %v897, %v896
    %v926 = vpack.c.b16 %v899, %v898
    %v927 = vpack.c.b16 %v901, %v900
    %v928 = vpack.c.b16 %v903, %v902
    %v929 = vpack.c.b16 %v905, %v904
    %v930 = vpack.c.b16 %v907, %v906
    %v931 = vpack.c.b16 %v909, %v908
    %v932 = vpack.c.b16 %v911, %v910
    %v933 = vpack.c.b16 %v913, %v912
    %v934 = vpack.c.b16 %v915, %v914
    %v935 = vpack.c.b16 %v917, %v916
    %v936 = vpack.c.b16 %v919, %v918
    %v937 = vpack.c.b16 %v921, %v920
    %954 = vmatpush.bf16.msra.mxu0 %v929
    %955 = vmatpush.bf16.msra.mxu0 %v928
    %956 = vmatpush.bf16.msra.mxu0 %v927
    %957 = vmatpush.bf16.msra.mxu0 %v926
    %958 = vmatpush.bf16.msra.mxu0 %v925
    %959 = vmatpush.bf16.msra.mxu0 %v924
    %960 = vmatpush.bf16.msra.mxu0 %v923
    %961 = vmatpush.bf16.msra.mxu0 %v922
    %962 = vmatmul.bf16.gmra.mxu0 %v820
    %v963 = vpop.f32.mrf.mxu0
    %v964 = vadd.f32 %v856, %v963
    %v965 = vpop.f32.mrf.mxu0
    %966 = vdwg.mxu0
    %967 = vmatpush.bf16.msra.mxu0 %v937
    %968 = vmatpush.bf16.msra.mxu0 %v936
    %969 = vmatpush.bf16.msra.mxu0 %v935
    %970 = vmatpush.bf16.msra.mxu0 %v934
    %971 = vmatpush.bf16.msra.mxu0 %v933
    %972 = vmatpush.bf16.msra.mxu0 %v932
    %973 = vmatpush.bf16.msra.mxu0 %v931
    %974 = vmatpush.bf16.msra.mxu0 %v930
    %975 = vmatmul.bf16.gmra.mxu0 %v821
    %v976 = vpop.f32.mrf.mxu0
    %v977 = vadd.f32 %v964, %v976
    %v978 = vpop.f32.mrf.mxu0
    %979 = vdwg.mxu0
    %980 = vst [vmem:[#allocation11] sm:$0xff] %v977
    // Predicated region
    $region50: #{tpu_custom_call.1} parent=1 // pred_check
      _
    $region51: #{tpu_custom_call.1} parent=1 // pred_check_branch
      %982 = sbr.rel (0) target = $region53
    $region52: #{tpu_custom_call.1} parent=1 // pred_region
      %984 = vsyncadd [#allocation4], 0
      %s986 = sshll.u32 [#allocation11], 4
      %s987 = int_to_ptr.vmem [resolvable:$true] %s986
      %s988 = sshll.u32 %s7, 4
      %s989 = int_to_ptr.hbm [resolvable:$true] %s988
      %991 = dma.vmem_to_hbm [thread:$0]  %s987, 128, %s989, [#allocation4]
    $region53: #{tpu_custom_call.1} parent=1 // pred_fallthru
      _
    // Predicated region
    $region54: #{tpu_custom_call.1} parent=1 // pred_check
      _
    $region55: #{tpu_custom_call.1} parent=1 // pred_check_branch
      %993 = sbr.rel (0) target = $region57
    $region56: #{tpu_custom_call.1} parent=1 // pred_region
      %995 = dma.done [#allocation4], 128
    $region57: #{tpu_custom_call.1} parent=1 // pred_fallthru
      _
    %996 = vsyncpa [#allocation3], 1
    %997 = vsyncpa [#allocation6], 1
    %998 = vsyncpa [#allocation9], 1
    %999 = vsyncpa [#allocation4], 1

</llo_original>
